<compile_context>
chip_gen: v7x
topology: tpu7x:2x2x1
jax: 0.10.0
libtpu: 0.0.40
codegen_flags: <defaults>
</compile_context>

<pallas_src>
import jax
import jax.numpy as jnp
from jax import lax
from jax.experimental import pallas as pl
from jax.experimental.pallas import tpu as pltpu


# ----------------------------------------------------------------------------
# Pallas kernel: one grid step = `bt` batch elements, full bottleneck fused.
# ----------------------------------------------------------------------------
def bottleneck_kernel(x_ref, w1_ref, b1_ref, w2_ref, b2_ref, w3_ref, b3_ref, o_ref):
    bt, c_in, seq = x_ref.shape
    width = w1_ref.shape[0]
    c_out = o_ref.shape[1]

    # Weights (bf16, BN folded) and biases (f32) — loaded once per grid step,
    # hoisted out of the batch loop.  Bias broadcasts are hoisted too (JAX does
    # not CSE broadcast_in_dim).
    w1 = w1_ref[...]                                   # (width, c_in)   bf16
    w2a, w2b, w2c = w2_ref[0], w2_ref[1], w2_ref[2]    # (width, width)  bf16 each
    w3 = w3_ref[...]                                   # (c_out, width)  bf16
    b1 = jnp.broadcast_to(b1_ref[...], (width, seq))   # f32
    b2 = jnp.broadcast_to(b2_ref[...], (width, seq))   # f32
    b3 = jnp.broadcast_to(b3_ref[...], (c_out, seq))   # f32

    # Sequence-boundary masks for the k=3 conv (l==0 has no left neighbour,
    # l==seq-1 has no right neighbour).  Built from a 2-D lane iota in-kernel.
    col = lax.broadcasted_iota(jnp.int32, (1, seq), 1)
    has_left = col >= 1
    has_right = col <= seq - 2

    # Static unroll over the (small) per-step batch tile.
    for b in range(bt):
        x_b = x_ref[b]                                  # (c_in, seq) f32
        xb16 = x_b.astype(jnp.bfloat16)

        # ---- conv1 (1x1) + BN1 + ReLU -----------------------------------
        h1 = jnp.dot(w1, xb16, preferred_element_type=jnp.float32) + b1
        h1 = jnp.maximum(h1, 0.0)                       # (width, seq) f32

        # ---- conv2 (k=3, stride=1, pad=1) + BN2 + ReLU -------------------
        # Three accumulating dots: tap0 @ h[l-1], tap1 @ h[l], tap2 @ h[l+1].
        left = jnp.where(has_left, pltpu.roll(h1, shift=1, axis=1), 0.0)
        right = jnp.where(has_right, pltpu.roll(h1, shift=seq - 1, axis=1), 0.0)
        h2 = jnp.dot(w2a, left.astype(jnp.bfloat16), preferred_element_type=jnp.float32)
        h2 = h2 + jnp.dot(w2b, h1.astype(jnp.bfloat16), preferred_element_type=jnp.float32)
        h2 = h2 + jnp.dot(w2c, right.astype(jnp.bfloat16), preferred_element_type=jnp.float32)
        h2 = jnp.maximum(h2 + b2, 0.0)                  # (width, seq) f32

        # ---- conv3 (1x1) + BN3 + identity residual + ReLU ----------------
        h3 = jnp.dot(w3, h2.astype(jnp.bfloat16), preferred_element_type=jnp.float32) + b3
        o_ref[b] = jnp.maximum(h3 + x_b, 0.0).astype(o_ref.dtype)


# ----------------------------------------------------------------------------
# Wrapper: NCL in / NCL out (exactly like nn.Conv1d) — no transposes, no pads.
# ----------------------------------------------------------------------------
def _fold_bn(gamma, beta, mean, var, eps):
    scale = gamma / jnp.sqrt(var + eps)
    bias = beta - mean * scale
    return scale, bias


def _pick_batch_tile(n, max_bt=8):
    """Largest divisor of n that is <= max_bt and keeps grid >= 2 when n >= 2
    (so both v7x TensorCores are fed via the 'parallel' grid axis)."""
    bt = 1
    for d in range(1, min(n, max_bt) + 1):
        if n % d == 0 and (n // d >= 2 or n < 2):
            bt = d
    return bt
    # TODO(synk): support n not divisible by bt (pad batch or cdiv grid + guard).


@jax.jit
def bottleneck_forward(x_ncl, params):
    # Eval-mode BatchNorm only (running statistics in params).
    eps = 1e-5
    p = params
    n, c_in, seq = x_ncl.shape
    width = p['w1'].shape[0]
    c_out = p['w3'].shape[0]

    # Identity residual (stride=1, downsample=None) requires matching channels.
    assert c_in == c_out, "identity residual needs in_channel == out_channel*expansion"

    # ---- fold BN into conv weights; pre-cast matmul operands to bf16 --------
    s1, b1 = _fold_bn(p['g1'], p['b1'], p['m1'], p['v1'], eps)
    s2, b2 = _fold_bn(p['g2'], p['b2'], p['m2'], p['v2'], eps)
    s3, b3 = _fold_bn(p['g3'], p['b3'], p['m3'], p['v3'], eps)

    w1f = (p['w1'] * s1[:, None]).astype(jnp.bfloat16)                       # (width, c_in)
    w2f = jnp.transpose(p['w2'] * s2[:, None, None], (2, 0, 1)).astype(jnp.bfloat16)  # (3, width, width)
    w3f = (p['w3'] * s3[:, None]).astype(jnp.bfloat16)                       # (c_out, width)
    b1c = b1.reshape(width, 1).astype(jnp.float32)
    b2c = b2.reshape(width, 1).astype(jnp.float32)
    b3c = b3.reshape(c_out, 1).astype(jnp.float32)

    bt = _pick_batch_tile(n)

    # VMEM budget from actual buffer sizes (double-buffered activation blocks,
    # resident weights) + headroom; clamped to a safe scoped range.
    blk_bytes = bt * seq * (c_in + c_out) * 4
    w_bytes = (w1f.size + w2f.size + w3f.size) * 2 + (b1c.size + b2c.size + b3c.size) * 4
    vmem_limit = int(min(100 << 20, max(32 << 20, 4 * blk_bytes + 2 * w_bytes + (2 << 20))))

    const2 = lambda i: (0, 0)      # weights/biases: constant block -> no re-DMA
    const3 = lambda i: (0, 0, 0)

    out = pl.pallas_call(
        bottleneck_kernel,
        out_shape=jax.ShapeDtypeStruct((n, c_out, seq), x_ncl.dtype),
        grid_spec=pltpu.PrefetchScalarGridSpec(
            num_scalar_prefetch=0,
            grid=(n // bt,),
            in_specs=[
                pl.BlockSpec((bt, c_in, seq), lambda i: (i, 0, 0)),   # x (NCL block)
                pl.BlockSpec((width, c_in), const2),                  # w1 (BN folded, bf16)
                pl.BlockSpec((width, 1), const2),                     # b1
                pl.BlockSpec((3, width, width), const3),              # w2 taps (bf16)
                pl.BlockSpec((width, 1), const2),                     # b2
                pl.BlockSpec((c_out, width), const2),                 # w3 (BN folded, bf16)
                pl.BlockSpec((c_out, 1), const2),                     # b3
            ],
            out_specs=pl.BlockSpec((bt, c_out, seq), lambda i: (i, 0, 0)),
        ),
        compiler_params=pltpu.CompilerParams(
            dimension_semantics=("parallel",),
            vmem_limit_bytes=vmem_limit),
    )(x_ncl, w1f, b1c, w2f, b2c, w3f, b3c)
    return out


# ----------------------------------------------------------------------------
# Pure-JAX reference (mirrors the PyTorch forward, eval-mode BN, f32).
# ----------------------------------------------------------------------------
def reference_forward(x_ncl, params, eps=1e-5):
    prec = jax.lax.Precision.HIGHEST

    def conv1d(x, w, padding=0):
        return jax.lax.conv_general_dilated(
            x, w, window_strides=(1,), padding=[(padding, padding)],
            dimension_numbers=('NCH', 'OIH', 'NCH'), precision=prec)

    def bn(x, g, b, m, v):
        inv = g / jnp.sqrt(v + eps)
        return x * inv[None, :, None] + (b - m * inv)[None, :, None]

    p = params
    out = jax.nn.relu(bn(conv1d(x_ncl, p['w1'][:, :, None]),
                         p['g1'], p['b1'], p['m1'], p['v1']))
    out = jax.nn.relu(bn(conv1d(out, p['w2'], padding=1),
                         p['g2'], p['b2'], p['m2'], p['v2']))
    out = bn(conv1d(out, p['w3'][:, :, None]),
             p['g3'], p['b3'], p['m3'], p['v3'])
    return jax.nn.relu(out + x_ncl)


if __name__ == "__main__":
    key = jax.random.PRNGKey(0)

    # Bottleneck(in_channel=32, out_channel=8): width=8, out channels = 8*4 = 32
    # (identity residual valid), batch=2, length=16.
    N, L = 2, 16
    out_channel, expansion = 8, 4
    width = out_channel                 # width_per_group=64, groups=1
    C_in = out_channel * expansion      # 32
    C_out4 = out_channel * expansion    # 32

    ks = jax.random.split(key, 16)
    x = jax.random.normal(ks[0], (N, C_in, L), jnp.float32)

    w1 = jax.random.normal(ks[1], (width, C_in), jnp.float32) * 0.1
    w2 = jax.random.normal(ks[2], (width, width, 3), jnp.float32) * 0.1
    w3 = jax.random.normal(ks[3], (C_out4, width), jnp.float32) * 0.1

    def bn_params(kg, kb, km, kv, c):
        g = 1.0 + 0.1 * jax.random.normal(kg, (c,), jnp.float32)
        b = 0.1 * jax.random.normal(kb, (c,), jnp.float32)
        m = 0.1 * jax.random.normal(km, (c,), jnp.float32)
        v = 0.5 + jnp.abs(jax.random.normal(kv, (c,), jnp.float32)) * 0.5
        return g, b, m, v

    g1, b1, m1, v1 = bn_params(ks[4], ks[5], ks[6], ks[7], width)
    g2, b2, m2, v2 = bn_params(ks[8], ks[9], ks[10], ks[11], width)
    g3, b3, m3, v3 = bn_params(ks[12], ks[13], ks[14], ks[15], C_out4)

    params = dict(w1=w1, w2=w2, w3=w3,
                  g1=g1, b1=b1, m1=m1, v1=v1,
                  g2=g2, b2=b2, m2=m2, v2=v2,
                  g3=g3, b3=b3, m3=m3, v3=v3)

    out = jax.block_until_ready(bottleneck_forward(x, params))
    ref = jax.block_until_ready(reference_forward(x, params))

    assert out.shape == (N, C_out4, L), out.shape
    # Tolerance sized deliberately for bf16 matmul operands (f32 accumulate):
    # expected max abs error is ~1e-2 across the three fused matmuls.
    err = float(jnp.max(jnp.abs(out - ref)))
    assert jnp.allclose(out, ref, atol=5e-2, rtol=5e-2), err
    print("KERNEL_OK")
</pallas_src>

<mosaic_0001>
module attributes {stable_mosaic.version = 11 : i64} {
  func.func @bottleneck_kernel(%arg0: i32, %arg1: memref<1x32x16xf32, #tpu.memory_space<vmem>>, %arg2: memref<8x32xbf16, #tpu.memory_space<vmem>>, %arg3: memref<8x1xf32, #tpu.memory_space<vmem>>, %arg4: memref<3x8x8xbf16, #tpu.memory_space<vmem>>, %arg5: memref<8x1xf32, #tpu.memory_space<vmem>>, %arg6: memref<32x8xbf16, #tpu.memory_space<vmem>>, %arg7: memref<32x1xf32, #tpu.memory_space<vmem>>, %arg8: memref<1x32x16xf32, #tpu.memory_space<vmem>>) attributes {dimension_semantics = [#tpu.dimension_semantics<parallel>], iteration_bounds = array<i64: 2>, scalar_prefetch = 0 : i64, scratch_operands = 0 : i64, tpu.core_type = #tpu.core_type<tc>, window_params = [{transform_indices = @transform_0, window_bounds = array<i64: 1, 32, 16>}, {pipeline_mode = #tpu.pipeline_mode<synchronous>, transform_indices = @transform_1, window_bounds = array<i64: 8, 32>}, {pipeline_mode = #tpu.pipeline_mode<synchronous>, transform_indices = @transform_2, window_bounds = array<i64: 8, 1>}, {pipeline_mode = #tpu.pipeline_mode<synchronous>, transform_indices = @transform_3, window_bounds = array<i64: 3, 8, 8>}, {pipeline_mode = #tpu.pipeline_mode<synchronous>, transform_indices = @transform_4, window_bounds = array<i64: 8, 1>}, {pipeline_mode = #tpu.pipeline_mode<synchronous>, transform_indices = @transform_5, window_bounds = array<i64: 32, 8>}, {pipeline_mode = #tpu.pipeline_mode<synchronous>, transform_indices = @transform_6, window_bounds = array<i64: 32, 1>}, {transform_indices = @transform_7, window_bounds = array<i64: 1, 32, 16>}]} {
    %c0 = arith.constant 0 : index
    %c0_0 = arith.constant 0 : index
    %0 = vector.load %arg2[%c0, %c0_0] : memref<8x32xbf16, #tpu.memory_space<vmem>>, vector<8x32xbf16>
    %c0_1 = arith.constant 0 : index
    %c0_2 = arith.constant 0 : index
    %c0_3 = arith.constant 0 : index
    %1 = vector.load %arg4[%c0_1, %c0_2, %c0_3] : memref<3x8x8xbf16, #tpu.memory_space<vmem>>, vector<1x8x8xbf16>
    %2 = vector.shape_cast %1 : vector<1x8x8xbf16> to vector<8x8xbf16>
    %c1 = arith.constant 1 : index
    %c0_4 = arith.constant 0 : index
    %c0_5 = arith.constant 0 : index
    %3 = vector.load %arg4[%c1, %c0_4, %c0_5] : memref<3x8x8xbf16, #tpu.memory_space<vmem>>, vector<1x8x8xbf16>
    %4 = vector.shape_cast %3 : vector<1x8x8xbf16> to vector<8x8xbf16>
    %c2 = arith.constant 2 : index
    %c0_6 = arith.constant 0 : index
    %c0_7 = arith.constant 0 : index
    %5 = vector.load %arg4[%c2, %c0_6, %c0_7] : memref<3x8x8xbf16, #tpu.memory_space<vmem>>, vector<1x8x8xbf16>
    %6 = vector.shape_cast %5 : vector<1x8x8xbf16> to vector<8x8xbf16>
    %c0_8 = arith.constant 0 : index
    %c0_9 = arith.constant 0 : index
    %7 = vector.load %arg6[%c0_8, %c0_9] : memref<32x8xbf16, #tpu.memory_space<vmem>>, vector<32x8xbf16>
    %c0_10 = arith.constant 0 : index
    %c0_11 = arith.constant 0 : index
    %8 = vector.load %arg3[%c0_10, %c0_11] : memref<8x1xf32, #tpu.memory_space<vmem>>, vector<8x1xf32>
    %9 = vector.shape_cast %8 : vector<8x1xf32> to vector<8x1xf32>
    %10 = vector.broadcast %9 : vector<8x1xf32> to vector<8x16xf32>
    %c0_12 = arith.constant 0 : index
    %c0_13 = arith.constant 0 : index
    %11 = vector.load %arg5[%c0_12, %c0_13] : memref<8x1xf32, #tpu.memory_space<vmem>>, vector<8x1xf32>
    %12 = vector.shape_cast %11 : vector<8x1xf32> to vector<8x1xf32>
    %13 = vector.broadcast %12 : vector<8x1xf32> to vector<8x16xf32>
    %c0_14 = arith.constant 0 : index
    %c0_15 = arith.constant 0 : index
    %14 = vector.load %arg7[%c0_14, %c0_15] : memref<32x1xf32, #tpu.memory_space<vmem>>, vector<32x1xf32>
    %15 = vector.shape_cast %14 : vector<32x1xf32> to vector<32x1xf32>
    %16 = vector.broadcast %15 : vector<32x1xf32> to vector<32x16xf32>
    %17 = tpu.iota {dimensions = array<i32: 1>} : vector<1x16xi32>
    %c1_i32 = arith.constant 1 : i32
    %18 = vector.broadcast %c1_i32 : i32 to vector<1x16xi32>
    %19 = arith.cmpi sge, %17, %18 : vector<1x16xi32>
    %c14_i32 = arith.constant 14 : i32
    %20 = vector.broadcast %c14_i32 : i32 to vector<1x16xi32>
    %21 = arith.cmpi sle, %17, %20 : vector<1x16xi32>
    %c0_16 = arith.constant 0 : index
    %c0_17 = arith.constant 0 : index
    %c0_18 = arith.constant 0 : index
    %22 = vector.load %arg1[%c0_16, %c0_17, %c0_18] : memref<1x32x16xf32, #tpu.memory_space<vmem>>, vector<1x32x16xf32>
    %23 = vector.shape_cast %22 : vector<1x32x16xf32> to vector<32x16xf32>
    %24 = arith.truncf %23 : vector<32x16xf32> to vector<32x16xbf16>
    %cst = arith.constant dense<0.000000e+00> : vector<8x16xf32>
    %25 = tpu.matmul %0, %24, %cst {dimension_numbers = #tpu.dot_dimension_numbers<[1], [0], [0], [1], [0, 0, 1, 1], [], []>} : vector<8x32xbf16>, vector<32x16xbf16>, vector<8x16xf32> -> vector<8x16xf32>
    %26 = arith.addf %25, %10 : vector<8x16xf32>
    %cst_19 = arith.constant 0.000000e+00 : f32
    %27 = vector.broadcast %cst_19 : f32 to vector<8x16xf32>
    %28 = arith.maximumf %26, %27 : vector<8x16xf32>
    %c1_i32_20 = arith.constant 1 : i32
    %29 = tpu.dynamic_rotate %28 by %c1_i32_20 dim 1 : vector<8x16xf32>, i32 -> vector<8x16xf32>
    %cst_21 = arith.constant 0.000000e+00 : f32
    %30 = vector.shape_cast %19 : vector<1x16xi1> to vector<1x16xi1>
    %31 = vector.broadcast %30 : vector<1x16xi1> to vector<8x16xi1>
    %32 = vector.broadcast %cst_21 : f32 to vector<8x16xf32>
    %33 = arith.select %31, %29, %32 : vector<8x16xi1>, vector<8x16xf32>
    %c15_i32 = arith.constant 15 : i32
    %34 = tpu.dynamic_rotate %28 by %c15_i32 dim 1 : vector<8x16xf32>, i32 -> vector<8x16xf32>
    %cst_22 = arith.constant 0.000000e+00 : f32
    %35 = vector.shape_cast %21 : vector<1x16xi1> to vector<1x16xi1>
    %36 = vector.broadcast %35 : vector<1x16xi1> to vector<8x16xi1>
    %37 = vector.broadcast %cst_22 : f32 to vector<8x16xf32>
    %38 = arith.select %36, %34, %37 : vector<8x16xi1>, vector<8x16xf32>
    %39 = arith.truncf %33 : vector<8x16xf32> to vector<8x16xbf16>
    %cst_23 = arith.constant dense<0.000000e+00> : vector<8x16xf32>
    %40 = tpu.matmul %2, %39, %cst_23 {dimension_numbers = #tpu.dot_dimension_numbers<[1], [0], [0], [1], [0, 0, 1, 1], [], []>} : vector<8x8xbf16>, vector<8x16xbf16>, vector<8x16xf32> -> vector<8x16xf32>
    %41 = arith.truncf %28 : vector<8x16xf32> to vector<8x16xbf16>
    %cst_24 = arith.constant dense<0.000000e+00> : vector<8x16xf32>
    %42 = tpu.matmul %4, %41, %cst_24 {dimension_numbers = #tpu.dot_dimension_numbers<[1], [0], [0], [1], [0, 0, 1, 1], [], []>} : vector<8x8xbf16>, vector<8x16xbf16>, vector<8x16xf32> -> vector<8x16xf32>
    %43 = arith.addf %40, %42 : vector<8x16xf32>
    %44 = arith.truncf %38 : vector<8x16xf32> to vector<8x16xbf16>
    %cst_25 = arith.constant dense<0.000000e+00> : vector<8x16xf32>
    %45 = tpu.matmul %6, %44, %cst_25 {dimension_numbers = #tpu.dot_dimension_numbers<[1], [0], [0], [1], [0, 0, 1, 1], [], []>} : vector<8x8xbf16>, vector<8x16xbf16>, vector<8x16xf32> -> vector<8x16xf32>
    %46 = arith.addf %43, %45 : vector<8x16xf32>
    %47 = arith.addf %46, %13 : vector<8x16xf32>
    %cst_26 = arith.constant 0.000000e+00 : f32
    %48 = vector.broadcast %cst_26 : f32 to vector<8x16xf32>
    %49 = arith.maximumf %47, %48 : vector<8x16xf32>
    %50 = arith.truncf %49 : vector<8x16xf32> to vector<8x16xbf16>
    %cst_27 = arith.constant dense<0.000000e+00> : vector<32x16xf32>
    %51 = tpu.matmul %7, %50, %cst_27 {dimension_numbers = #tpu.dot_dimension_numbers<[1], [0], [0], [1], [0, 0, 1, 1], [], []>} : vector<32x8xbf16>, vector<8x16xbf16>, vector<32x16xf32> -> vector<32x16xf32>
    %52 = arith.addf %51, %16 : vector<32x16xf32>
    %53 = arith.addf %52, %23 : vector<32x16xf32>
    %cst_28 = arith.constant 0.000000e+00 : f32
    %54 = vector.broadcast %cst_28 : f32 to vector<32x16xf32>
    %55 = arith.maximumf %53, %54 : vector<32x16xf32>
    %c0_29 = arith.constant 0 : index
    %c0_30 = arith.constant 0 : index
    %c0_31 = arith.constant 0 : index
    %56 = vector.load %arg8[%c0_29, %c0_30, %c0_31] : memref<1x32x16xf32, #tpu.memory_space<vmem>>, vector<1x32x16xf32>
    %57 = vector.shape_cast %56 : vector<1x32x16xf32> to vector<32x16xf32>
    %58 = vector.shape_cast %55 : vector<32x16xf32> to vector<1x32x16xf32>
    tpu.vector_store %arg8[%c0_29, %c0_30, %c0_31], %58 {strides = array<i32>} : memref<1x32x16xf32, #tpu.memory_space<vmem>>, vector<1x32x16xf32>,
    return
  }
  func.func @transform_0(%arg0: i32) -> (i32, i32, i32) {
    %c0_i32 = arith.constant 0 : i32
    %c0_i32_0 = arith.constant 0 : i32
    %c0_i32_1 = arith.constant 0 : i32
    return %arg0, %c0_i32, %c0_i32_0 : i32, i32, i32
  }
  func.func @transform_1(%arg0: i32) -> (i32, i32) {
    %c0_i32 = arith.constant 0 : i32
    %c0_i32_0 = arith.constant 0 : i32
    %c0_i32_1 = arith.constant 0 : i32
    return %c0_i32, %c0_i32_0 : i32, i32
  }
  func.func @transform_2(%arg0: i32) -> (i32, i32) {
    %c0_i32 = arith.constant 0 : i32
    %c0_i32_0 = arith.constant 0 : i32
    %c0_i32_1 = arith.constant 0 : i32
    return %c0_i32, %c0_i32_0 : i32, i32
  }
  func.func @transform_3(%arg0: i32) -> (i32, i32, i32) {
    %c0_i32 = arith.constant 0 : i32
    %c0_i32_0 = arith.constant 0 : i32
    %c0_i32_1 = arith.constant 0 : i32
    %c0_i32_2 = arith.constant 0 : i32
    return %c0_i32, %c0_i32_0, %c0_i32_1 : i32, i32, i32
  }
  func.func @transform_4(%arg0: i32) -> (i32, i32) {
    %c0_i32 = arith.constant 0 : i32
    %c0_i32_0 = arith.constant 0 : i32
    %c0_i32_1 = arith.constant 0 : i32
    return %c0_i32, %c0_i32_0 : i32, i32
  }
  func.func @transform_5(%arg0: i32) -> (i32, i32) {
    %c0_i32 = arith.constant 0 : i32
    %c0_i32_0 = arith.constant 0 : i32
    %c0_i32_1 = arith.constant 0 : i32
    return %c0_i32, %c0_i32_0 : i32, i32
  }
  func.func @transform_6(%arg0: i32) -> (i32, i32) {
    %c0_i32 = arith.constant 0 : i32
    %c0_i32_0 = arith.constant 0 : i32
    %c0_i32_1 = arith.constant 0 : i32
    return %c0_i32, %c0_i32_0 : i32, i32
  }
  func.func @transform_7(%arg0: i32) -> (i32, i32, i32) {
    %c0_i32 = arith.constant 0 : i32
    %c0_i32_0 = arith.constant 0 : i32
    %c0_i32_1 = arith.constant 0 : i32
    return %arg0, %c0_i32, %c0_i32_0 : i32, i32, i32
  }
}

</mosaic_0001>

<llo_original>
// kernel: bottleneck_forward.1
$region0: #{bottleneck_forward.1}
  #allocation0 [shape = 'u32[]', space=smem, size = 0x4, offset = 0x4, fixed_abs, tag = 'smem constant byte address 0x4 - core index']
  #allocation1 [shape = 'u32[144,128]{1,0:T(1,128)}', space=vmem, size = 0x12000, scoped, tag = 'internal scratch']
  %s0 = inlined_call_operand.vmem [shape: f32[2,32,16], index: 0, kind: input, shape index: {}]
  %s1 = inlined_call_operand.vmem [shape: bf16[8,32], index: 1, kind: input, shape index: {}]
  %s2 = inlined_call_operand.vmem [shape: f32[8,1], index: 2, kind: input, shape index: {}]
  %s3 = inlined_call_operand.vmem [shape: bf16[3,8,8], index: 3, kind: input, shape index: {}]
  %s4 = inlined_call_operand.vmem [shape: f32[8,1], index: 4, kind: input, shape index: {}]
  %s5 = inlined_call_operand.vmem [shape: bf16[32,8], index: 5, kind: input, shape index: {}]
  %s6 = inlined_call_operand.vmem [shape: f32[32,1], index: 6, kind: input, shape index: {}]
  %s7 = inlined_call_operand.vmem [shape: f32[2,32,16], index: 7, kind: output, shape index: {}]
  %s8 = sld [smem:[#allocation0]]
  $region61: #{bottleneck_forward.1} parent=0
    _
  %s10 = ssub.s32 1, %s8
  %s11 = scalar_select 0, %s10, %s8
  loop: start=0, step=1, limit=4
  $region2: #{bottleneck_forward.1} parent=0 // loop_pre_header
    _
  $region3: #{bottleneck_forward.1} parent=0 // loop_header
    %s13 = sphi 0, %s17
    %p14 = scmp.ge.s32.totalorder %s13, 4
    %s23 = sphi 0, %s25
    %s26 = sphi 0, %s23
    %s27 = sphi 0, %s26
    %s43 = sphi 0, %s27
    %s47 = sphi 0, %s47
    %s49 = sphi 0, %s47
    %s50 = sphi 0, %s49
    %s64 = sphi 0, %s50
    %s68 = sphi 0, %s68
    %s70 = sphi 0, %s68
    %s71 = sphi 0, %s70
    %s85 = sphi 0, %s71
    %s89 = sphi 0, %s89
    %s91 = sphi 0, %s89
    %s92 = sphi 0, %s91
    %s106 = sphi 0, %s92
    %s110 = sphi 0, %s110
    %s112 = sphi 0, %s110
    %s113 = sphi 0, %s112
    %s127 = sphi 0, %s113
    %s131 = sphi 0, %s131
    %s133 = sphi 0, %s131
    %s134 = sphi 0, %s133
    %s148 = sphi 0, %s134
    %s152 = sphi 0, %s152
    %s154 = sphi 0, %s152
    %s155 = sphi 0, %s154
    %s169 = sphi 0, %s155
    %s175 = sphi 0, %s177
    %s178 = sphi 0, %s175
    %s179 = sphi 0, %s178
    %s195 = sphi 0, %s179
  $region4: #{bottleneck_forward.1} parent=0 // loop_header_branch
    %16 = sbr.rel (%p14) target = $region8
  $region5: #{bottleneck_forward.1} parent=0 // loop_body
    %s18 = ssub.s32 %s13, 1
    %s19 = ssub.s32 %s13, 2
    %s20 = sadd.s32 %s13, 1
    %s21 = ssub.s32 %s13, %s20
    %p22 = scmp.eq.s32.totalorder %s21, 0
    %s24 = sadd.s32 %s23, 1
    %s25 = scalar_select %p22, %s23, %s24
    %p28 = pneg %p22
    %p29 = scmp.eq.s32.totalorder %s13, 1
    %p30 = por %p28, %p29
    %p31 = scmp.ne.s32.totalorder %s23, %s26
    %p32 = scmp.eq.s32.totalorder %s13, 0
    %p33 = por %p31, %p32
    %p34 = scmp.ne.s32.totalorder %s23, %s26
    %p35 = scmp.eq.s32.totalorder %s18, 1
    %p36 = por %p34, %p35
    %p37 = scmp.ne.s32.totalorder %s26, %s27
    %p38 = scmp.eq.s32.totalorder %s18, 0
    %p39 = por %p37, %p38
    %p40 = scmp.ne.s32.totalorder %s26, %s27
    %p41 = scmp.eq.s32.totalorder %s19, 1
    %p42 = por %p40, %p41
    %p44 = scmp.ne.s32.totalorder %s27, %s43
    %p45 = scmp.eq.s32.totalorder %s19, 0
    %p46 = por %p44, %p45
    %s48 = sadd.s32 %s47, 1
    %p51 = scmp.eq.s32.totalorder %s13, 1
    %p52 = scmp.ne.s32.totalorder %s47, %s49
    %p53 = scmp.eq.s32.totalorder %s13, 0
    %p54 = por %p52, %p53
    %p55 = scmp.ne.s32.totalorder %s47, %s49
    %p56 = scmp.eq.s32.totalorder %s18, 1
    %p57 = por %p55, %p56
    %p58 = scmp.ne.s32.totalorder %s49, %s50
    %p59 = scmp.eq.s32.totalorder %s18, 0
    %p60 = por %p58, %p59
    %p61 = scmp.ne.s32.totalorder %s49, %s50
    %p62 = scmp.eq.s32.totalorder %s19, 1
    %p63 = por %p61, %p62
    %p65 = scmp.ne.s32.totalorder %s50, %s64
    %p66 = scmp.eq.s32.totalorder %s19, 0
    %p67 = por %p65, %p66
    %s69 = sadd.s32 %s68, 1
    %p72 = scmp.eq.s32.totalorder %s13, 1
    %p73 = scmp.ne.s32.totalorder %s68, %s70
    %p74 = scmp.eq.s32.totalorder %s13, 0
    %p75 = por %p73, %p74
    %p76 = scmp.ne.s32.totalorder %s68, %s70
    %p77 = scmp.eq.s32.totalorder %s18, 1
    %p78 = por %p76, %p77
    %p79 = scmp.ne.s32.totalorder %s70, %s71
    %p80 = scmp.eq.s32.totalorder %s18, 0
    %p81 = por %p79, %p80
    %p82 = scmp.ne.s32.totalorder %s70, %s71
    %p83 = scmp.eq.s32.totalorder %s19, 1
    %p84 = por %p82, %p83
    %p86 = scmp.ne.s32.totalorder %s71, %s85
    %p87 = scmp.eq.s32.totalorder %s19, 0
    %p88 = por %p86, %p87
    %s90 = sadd.s32 %s89, 1
    %p93 = scmp.eq.s32.totalorder %s13, 1
    %p94 = scmp.ne.s32.totalorder %s89, %s91
    %p95 = scmp.eq.s32.totalorder %s13, 0
    %p96 = por %p94, %p95
    %p97 = scmp.ne.s32.totalorder %s89, %s91
    %p98 = scmp.eq.s32.totalorder %s18, 1
    %p99 = por %p97, %p98
    %p100 = scmp.ne.s32.totalorder %s91, %s92
    %p101 = scmp.eq.s32.totalorder %s18, 0
    %p102 = por %p100, %p101
    %p103 = scmp.ne.s32.totalorder %s91, %s92
    %p104 = scmp.eq.s32.totalorder %s19, 1
    %p105 = por %p103, %p104
    %p107 = scmp.ne.s32.totalorder %s92, %s106
    %p108 = scmp.eq.s32.totalorder %s19, 0
    %p109 = por %p107, %p108
    %s111 = sadd.s32 %s110, 1
    %p114 = scmp.eq.s32.totalorder %s13, 1
    %p115 = scmp.ne.s32.totalorder %s110, %s112
    %p116 = scmp.eq.s32.totalorder %s13, 0
    %p117 = por %p115, %p116
    %p118 = scmp.ne.s32.totalorder %s110, %s112
    %p119 = scmp.eq.s32.totalorder %s18, 1
    %p120 = por %p118, %p119
    %p121 = scmp.ne.s32.totalorder %s112, %s113
    %p122 = scmp.eq.s32.totalorder %s18, 0
    %p123 = por %p121, %p122
    %p124 = scmp.ne.s32.totalorder %s112, %s113
    %p125 = scmp.eq.s32.totalorder %s19, 1
    %p126 = por %p124, %p125
    %p128 = scmp.ne.s32.totalorder %s113, %s127
    %p129 = scmp.eq.s32.totalorder %s19, 0
    %p130 = por %p128, %p129
    %s132 = sadd.s32 %s131, 1
    %p135 = scmp.eq.s32.totalorder %s13, 1
    %p136 = scmp.ne.s32.totalorder %s131, %s133
    %p137 = scmp.eq.s32.totalorder %s13, 0
    %p138 = por %p136, %p137
    %p139 = scmp.ne.s32.totalorder %s131, %s133
    %p140 = scmp.eq.s32.totalorder %s18, 1
    %p141 = por %p139, %p140
    %p142 = scmp.ne.s32.totalorder %s133, %s134
    %p143 = scmp.eq.s32.totalorder %s18, 0
    %p144 = por %p142, %p143
    %p145 = scmp.ne.s32.totalorder %s133, %s134
    %p146 = scmp.eq.s32.totalorder %s19, 1
    %p147 = por %p145, %p146
    %p149 = scmp.ne.s32.totalorder %s134, %s148
    %p150 = scmp.eq.s32.totalorder %s19, 0
    %p151 = por %p149, %p150
    %s153 = sadd.s32 %s152, 1
    %p156 = scmp.eq.s32.totalorder %s13, 1
    %p157 = scmp.ne.s32.totalorder %s152, %s154
    %p158 = scmp.eq.s32.totalorder %s13, 0
    %p159 = por %p157, %p158
    %p160 = scmp.ne.s32.totalorder %s152, %s154
    %p161 = scmp.eq.s32.totalorder %s18, 1
    %p162 = por %p160, %p161
    %p163 = scmp.ne.s32.totalorder %s154, %s155
    %p164 = scmp.eq.s32.totalorder %s18, 0
    %p165 = por %p163, %p164
    %p166 = scmp.ne.s32.totalorder %s154, %s155
    %p167 = scmp.eq.s32.totalorder %s19, 1
    %p168 = por %p166, %p167
    %p170 = scmp.ne.s32.totalorder %s155, %s169
    %p171 = scmp.eq.s32.totalorder %s19, 0
    %p172 = por %p170, %p171
    %s173 = ssub.s32 %s13, %s20
    %p174 = scmp.eq.s32.totalorder %s173, 0
    %s176 = sadd.s32 %s175, 1
    %s177 = scalar_select %p174, %s175, %s176
    %p180 = pneg %p174
    %p181 = scmp.eq.s32.totalorder %s13, 1
    %p182 = por %p180, %p181
    %p183 = scmp.ne.s32.totalorder %s175, %s178
    %p184 = scmp.eq.s32.totalorder %s13, 0
    %p185 = por %p183, %p184
    %p186 = scmp.ne.s32.totalorder %s175, %s178
    %p187 = scmp.eq.s32.totalorder %s18, 1
    %p188 = por %p186, %p187
    %p189 = scmp.ne.s32.totalorder %s178, %s179
    %p190 = scmp.eq.s32.totalorder %s18, 0
    %p191 = por %p189, %p190
    %p192 = scmp.ne.s32.totalorder %s178, %s179
    %p193 = scmp.eq.s32.totalorder %s19, 1
    %p194 = por %p192, %p193
    %p196 = scmp.ne.s32.totalorder %s179, %s195
    %p197 = scmp.eq.s32.totalorder %s19, 0
    %p198 = por %p196, %p197
    %p199 = scmp.le.s32.totalorder 1, %s13
    %p200 = scmp.lt.s32.totalorder %s13, 3
    %p201 = pnand %p199, %p200
    %p202 = pneg %p201
    // Predicated region
    $region9: #{bottleneck_forward.1} parent=5 // pred_check
      _
    $region10: #{bottleneck_forward.1} parent=5 // pred_check_branch
      %204 = sbr.rel (%p201) target = $region12
    $region11: #{bottleneck_forward.1} parent=5 // pred_region
      %s205 = ssub.s32 %s13, 1
      // Predicated region
      $region13: #{bottleneck_forward.1} parent=11 // pred_check
        %p206 = pneg %p60
      $region14: #{bottleneck_forward.1} parent=11 // pred_check_branch
        %208 = sbr.rel (%p206) target = $region16
      $region15: #{bottleneck_forward.1} parent=11 // pred_region
        _
      $region16: #{bottleneck_forward.1} parent=11 // pred_fallthru
        _
      // Predicated region
      $region17: #{bottleneck_forward.1} parent=11 // pred_check
        %p209 = pneg %p81
      $region18: #{bottleneck_forward.1} parent=11 // pred_check_branch
        %211 = sbr.rel (%p209) target = $region20
      $region19: #{bottleneck_forward.1} parent=11 // pred_region
        _
      $region20: #{bottleneck_forward.1} parent=11 // pred_fallthru
        _
      // Predicated region
      $region21: #{bottleneck_forward.1} parent=11 // pred_check
        %p212 = pneg %p102
      $region22: #{bottleneck_forward.1} parent=11 // pred_check_branch
        %214 = sbr.rel (%p212) target = $region24
      $region23: #{bottleneck_forward.1} parent=11 // pred_region
        _
      $region24: #{bottleneck_forward.1} parent=11 // pred_fallthru
        _
      // Predicated region
      $region25: #{bottleneck_forward.1} parent=11 // pred_check
        %p215 = pneg %p123
      $region26: #{bottleneck_forward.1} parent=11 // pred_check_branch
        %217 = sbr.rel (%p215) target = $region28
      $region27: #{bottleneck_forward.1} parent=11 // pred_region
        _
      $region28: #{bottleneck_forward.1} parent=11 // pred_fallthru
        _
      // Predicated region
      $region29: #{bottleneck_forward.1} parent=11 // pred_check
        %p218 = pneg %p144
      $region30: #{bottleneck_forward.1} parent=11 // pred_check_branch
        %220 = sbr.rel (%p218) target = $region32
      $region31: #{bottleneck_forward.1} parent=11 // pred_region
        _
      $region32: #{bottleneck_forward.1} parent=11 // pred_fallthru
        _
      // Predicated region
      $region33: #{bottleneck_forward.1} parent=11 // pred_check
        %p221 = pneg %p165
      $region34: #{bottleneck_forward.1} parent=11 // pred_check_branch
        %223 = sbr.rel (%p221) target = $region36
      $region35: #{bottleneck_forward.1} parent=11 // pred_region
        _
      $region36: #{bottleneck_forward.1} parent=11 // pred_fallthru
        _
    $region12: #{bottleneck_forward.1} parent=5 // pred_fallthru
      _
    %p224 = scmp.lt.s32.totalorder %s13, 2
    // Predicated region
    $region37: #{bottleneck_forward.1} parent=5 // pred_check
      %p225 = pneg %p224
    $region38: #{bottleneck_forward.1} parent=5 // pred_check_branch
      %227 = sbr.rel (%p225) target = $region40
    $region39: #{bottleneck_forward.1} parent=5 // pred_region
      // Predicated region
      $region41: #{bottleneck_forward.1} parent=39 // pred_check
        %p228 = pneg %p33
      $region42: #{bottleneck_forward.1} parent=39 // pred_check_branch
        %230 = sbr.rel (%p228) target = $region44
      $region43: #{bottleneck_forward.1} parent=39 // pred_region
        %p231 = scmp.lt.s32.totalorder %s13, 1
        %s232 = scalar_select %p231, %s13, 1
        %s233 = smul.addr %s232, 4
        %s234 = smul.addr %s233, 8
        %s235 = scalar_lea.vmem %s0, %s234
      $region44: #{bottleneck_forward.1} parent=39 // pred_fallthru
        _
    $region40: #{bottleneck_forward.1} parent=5 // pred_fallthru
      _
    %p236 = scmp.le.s32.totalorder 1, %s13
    %p237 = scmp.lt.s32.totalorder %s13, 3
    %p238 = pnand %p236, %p237
    %p239 = pneg %p238
    // Predicated region
    $region45: #{bottleneck_forward.1} parent=5 // pred_check
      _
    $region46: #{bottleneck_forward.1} parent=5 // pred_check_branch
      %241 = sbr.rel (%p238) target = $region48
    $region47: #{bottleneck_forward.1} parent=5 // pred_region
      %s242 = ssub.s32 %s13, 1
      %p243 = scmp.lt.s32.totalorder %s18, 1
      %s244 = scalar_select %p243, %s18, 1
      %s245 = smul.addr %s244, 4
      %s246 = smul.addr %s245, 8
      %s247 = scalar_lea.vmem %s0, %s246
      %p248 = pneg %p39
      %p249 = pneg %p36
      %p250 = pneg %p60
      %p251 = pneg %p57
      %p252 = pneg %p81
      %p253 = pneg %p78
      %p254 = pneg %p102
      %p255 = pneg %p99
      %p256 = pneg %p123
      %p257 = pneg %p120
      %p258 = pneg %p144
      %p259 = pneg %p141
      %p260 = pneg %p165
      %p261 = pneg %p162
      %p262 = pneg %p191
      %p263 = pneg %p188
      %p264 = scmp.lt.s32.totalorder %s18, 1
      %s265 = scalar_select %p264, %s18, 1
      %s266 = smul.addr %s265, 4
      %s267 = smul.addr %s266, 8
      %s268 = scalar_lea.vmem %s7, %s267
      %p269 = scmp.lt.s32.totalorder %s18, 1
      %s270 = scalar_select %p269, %s18, 1
      %s271 = smul.addr %s270, 4
      %s272 = smul.addr %s271, 8
      %s273 = scalar_lea.vmem %s0, %s272
      %p274 = scmp.lt.s32.totalorder %s18, 1
      %s275 = scalar_select %p274, %s18, 1
      %s276 = smul.addr %s275, 4
      %s277 = smul.addr %s276, 8
      %s278 = scalar_lea.vmem %s7, %s277
      %v280 = vld [vmem:[%s1] sm:$0xf]
      %v281 = vld [vmem:[%s3] sm:$0xf]
      %s282 = scalar_lea.vmem %s3, 4
      %v283 = vld [vmem:[%s282] sm:$0xf]
      %s284 = scalar_lea.vmem %s3, 8
      %v285 = vld [vmem:[%s284] sm:$0xf]
      %v286 = vld [vmem:[%s5] sm:$0xf]
      %v287 = vld [vmem:[%s5 + $0x4] sm:$0xf]
      %v288 = vld [vmem:[%s5 + $0x8] sm:$0xf]
      %v289 = vld [vmem:[%s5 + $0xc] sm:$0xf]
      %v290 = vld [vmem:[%s2] sm:$0xff]
      %292 = vset.pattern.permute.xlu0 0
      %293 = vperm.xlu0 %292, %v290
      %v294 = vpop.permute.xlu0 %293
      %v296 = vld [vmem:[%s4] sm:$0xff]
      %298 = vset.pattern.permute.xlu0 0
      %299 = vperm.xlu0 %298, %v296
      %v300 = vpop.permute.xlu0 %299
      %v302 = vld [vmem:[%s6] sm:$0xff]
      %v303 = vld [vmem:[%s6 + $0x8] sm:$0xff]
      %v304 = vld [vmem:[%s6 + $0x10] sm:$0xff]
      %v305 = vld [vmem:[%s6 + $0x18] sm:$0xff]
      %307 = vset.pattern.permute.xlu0 0
      %308 = vperm.xlu0 %307, %v302
      %v309 = vpop.permute.xlu0 %308
      %312 = vset.pattern.permute.xlu0 0
      %313 = vperm.xlu0 %312, %v303
      %v314 = vpop.permute.xlu0 %313
      %317 = vset.pattern.permute.xlu0 0
      %318 = vperm.xlu0 %317, %v304
      %v319 = vpop.permute.xlu0 %318
      %322 = vset.pattern.permute.xlu0 0
      %323 = vperm.xlu0 %322, %v305
      %v324 = vpop.permute.xlu0 %323
      %v326 = vlaneseq
      %v327 = vand.u32 %v326, 127
      %vm328 = vcmp.ge.s32.totalorder %v327, 1
      %vm329 = vcmp.le.s32.totalorder %v327, 14
      %v330 = vld [vmem:[%s273] sm:$0xff]
      %v331 = vld [vmem:[%s273 + $0x8] sm:$0xff]
      %v332 = vld [vmem:[%s273 + $0x10] sm:$0xff]
      %v333 = vld [vmem:[%s273 + $0x18] sm:$0xff]
      %v334 = vpack.c.bf16 %v331, %v330
      %v335 = vpack.c.bf16 %v333, %v332
      %vm336 = vcmask 261120
      %v338 = vsel %vm336, %v280, 0
      %340 = vmatprep.subr.bf16.mxu0 0
      %341 = vmatpush1.bf16.msra.mxu0 %v334
      %342 = vmatprep.subr.bf16.mxu0 0
      %343 = vmatpush1.bf16.msra.mxu0 %v335
      %344 = vmatprep.subr.bf16.mxu0 0
      %345 = vmatpush1.bf16.msra.mxu0 0
      %346 = vmatprep.subr.bf16.mxu0 0
      %347 = vmatpush1.bf16.msra.mxu0 0
      %348 = vmatprep.subr.bf16.mxu0 0
      %349 = vmatpush1.bf16.msra.mxu0 0
      %350 = vmatprep.subr.bf16.mxu0 0
      %351 = vmatpush1.bf16.msra.mxu0 0
      %352 = vmatprep.subr.bf16.mxu0 0
      %353 = vmatpush1.bf16.msra.mxu0 0
      %354 = vmatprep.subr.bf16.mxu0 0
      %355 = vmatpush1.bf16.msra.mxu0 0
      %356 = vmatprep.subr.bf16.mxu0 0
      %357 = vmatpush1.bf16.msra.mxu0 0
      %358 = vmatprep.subr.bf16.mxu0 0
      %359 = vmatpush1.bf16.msra.mxu0 0
      %360 = vmatprep.subr.bf16.mxu0 0
      %361 = vmatpush1.bf16.msra.mxu0 0
      %362 = vmatprep.subr.bf16.mxu0 0
      %363 = vmatpush1.bf16.msra.mxu0 0
      %364 = vmatprep.subr.bf16.mxu0 0
      %365 = vmatpush1.bf16.msra.mxu0 0
      %366 = vmatprep.subr.bf16.mxu0 0
      %367 = vmatpush1.bf16.msra.mxu0 0
      %368 = vmatprep.subr.bf16.mxu0 0
      %369 = vmatpush1.bf16.msra.mxu0 0
      %370 = vmatprep.subr.bf16.mxu0 0
      %371 = vmatpush1.bf16.msra.mxu0 0
      %372 = vmatprep.mubr.bf16.mxu0 0
      %373 = vmatmul.mubr.bf16.gmra.mrb[0].mxu0 %v338
      %v374 = vpop.f32.mrb[0].mxu0
      %v375 = vadd.f32 %v294, %v374
      %v376 = vpop.f32.mrb[0].mxu0
      %v377 = vpop.f32.mrb[0].mxu0
      %v378 = vpop.f32.mrb[0].mxu0
      %379 = vdwg.mxu0
      %v380 = vmax.f32 %v375, 0.0
      %vm381 = vcmask 1047680
      %382 = vrot.lane.b32.xlu0 %v380, 16
      %v383 = vpop.permute.xlu0 %382
      %v384 = vsel %vm381, %v383, %v380
      %385 = vrot.lane.b32.xlu0 %v384, 16
      %v386 = vpop.permute.xlu0 %385
      %v387 = vsel %vm381, %v386, %v380
      %v388 = vsel %vm328, 1, 0
      %vm389 = vcmp.eq.s32.totalorder %v388, 1
      %391 = vrot.lane.b32.xlu0 %v387, 113
      %v392 = vpop.permute.xlu0 %391
      %v394 = vsel %vm389, %v392, 0.0
      %v395 = vsel %vm329, 1, 0
      %vm396 = vcmp.eq.s32.totalorder %v395, 1
      %397 = vrot.lane.b32.xlu0 %v387, 127
      %v398 = vpop.permute.xlu0 %397
      %v400 = vsel %vm396, %v398, 0.0
      %v401 = vpack.c.bf16 %v394, %v394
      %v402 = vpack.c.bf16 %v380, %v380
      %vm403 = vcmask 64512
      %v405 = vsel %vm403, %v283, 0
      %vm407 = vcmask 1043456
      %v409 = vsel %vm407, %v402, 0
      %411 = vmatprep.subr.bf16.mxu0 0
      %412 = vmatpush1.bf16.msra.mxu0 %v409
      %413 = vmatprep.subr.bf16.mxu0 0
      %414 = vmatpush1.bf16.msra.mxu0 0
      %415 = vmatprep.subr.bf16.mxu0 0
      %416 = vmatpush1.bf16.msra.mxu0 0
      %417 = vmatprep.subr.bf16.mxu0 0
      %418 = vmatpush1.bf16.msra.mxu0 0
      %419 = vmatprep.subr.bf16.mxu0 0
      %420 = vmatpush1.bf16.msra.mxu0 0
      %421 = vmatprep.subr.bf16.mxu0 0
      %422 = vmatpush1.bf16.msra.mxu0 0
      %423 = vmatprep.subr.bf16.mxu0 0
      %424 = vmatpush1.bf16.msra.mxu0 0
      %425 = vmatprep.subr.bf16.mxu0 0
      %426 = vmatpush1.bf16.msra.mxu0 0
      %427 = vmatprep.subr.bf16.mxu0 0
      %428 = vmatpush1.bf16.msra.mxu0 0
      %429 = vmatprep.subr.bf16.mxu0 0
      %430 = vmatpush1.bf16.msra.mxu0 0
      %431 = vmatprep.subr.bf16.mxu0 0
      %432 = vmatpush1.bf16.msra.mxu0 0
      %433 = vmatprep.subr.bf16.mxu0 0
      %434 = vmatpush1.bf16.msra.mxu0 0
      %435 = vmatprep.subr.bf16.mxu0 0
      %436 = vmatpush1.bf16.msra.mxu0 0
      %437 = vmatprep.subr.bf16.mxu0 0
      %438 = vmatpush1.bf16.msra.mxu0 0
      %439 = vmatprep.subr.bf16.mxu0 0
      %440 = vmatpush1.bf16.msra.mxu0 0
      %441 = vmatprep.subr.bf16.mxu0 0
      %442 = vmatpush1.bf16.msra.mxu0 0
      %443 = vmatprep.mubr.bf16.mxu0 0
      %444 = vmatmul.mubr.bf16.gmra.mrb[0].mxu0 %v405
      %v445 = vpop.f32.mrb[0].mxu0
      %v446 = vadd.f32 0.0, %v445
      %v447 = vpop.f32.mrb[0].mxu0
      %v448 = vpop.f32.mrb[0].mxu0
      %v449 = vpop.f32.mrb[0].mxu0
      %450 = vdwg.mxu0
      %v452 = vsel %vm403, %v281, 0
      %v455 = vsel %vm407, %v401, 0
      %457 = vmatprep.subr.bf16.mxu0 0
      %458 = vmatpush1.bf16.msra.mxu0 %v455
      %459 = vmatprep.subr.bf16.mxu0 0
      %460 = vmatpush1.bf16.msra.mxu0 0
      %461 = vmatprep.subr.bf16.mxu0 0
      %462 = vmatpush1.bf16.msra.mxu0 0
      %463 = vmatprep.subr.bf16.mxu0 0
      %464 = vmatpush1.bf16.msra.mxu0 0
      %465 = vmatprep.subr.bf16.mxu0 0
      %466 = vmatpush1.bf16.msra.mxu0 0
      %467 = vmatprep.subr.bf16.mxu0 0
      %468 = vmatpush1.bf16.msra.mxu0 0
      %469 = vmatprep.subr.bf16.mxu0 0
      %470 = vmatpush1.bf16.msra.mxu0 0
      %471 = vmatprep.subr.bf16.mxu0 0
      %472 = vmatpush1.bf16.msra.mxu0 0
      %473 = vmatprep.subr.bf16.mxu0 0
      %474 = vmatpush1.bf16.msra.mxu0 0
      %475 = vmatprep.subr.bf16.mxu0 0
      %476 = vmatpush1.bf16.msra.mxu0 0
      %477 = vmatprep.subr.bf16.mxu0 0
      %478 = vmatpush1.bf16.msra.mxu0 0
      %479 = vmatprep.subr.bf16.mxu0 0
      %480 = vmatpush1.bf16.msra.mxu0 0
      %481 = vmatprep.subr.bf16.mxu0 0
      %482 = vmatpush1.bf16.msra.mxu0 0
      %483 = vmatprep.subr.bf16.mxu0 0
      %484 = vmatpush1.bf16.msra.mxu0 0
      %485 = vmatprep.subr.bf16.mxu0 0
      %486 = vmatpush1.bf16.msra.mxu0 0
      %487 = vmatprep.subr.bf16.mxu0 0
      %488 = vmatpush1.bf16.msra.mxu0 0
      %489 = vmatprep.mubr.bf16.mxu0 0
      %490 = vmatmul.mubr.bf16.gmra.mrb[0].mxu0 %v452
      %v491 = vpop.f32.mrb[0].mxu0
      %v492 = vadd.f32 %v446, %v491
      %v493 = vpop.f32.mrb[0].mxu0
      %v494 = vpop.f32.mrb[0].mxu0
      %v495 = vpop.f32.mrb[0].mxu0
      %496 = vdwg.mxu0
      %v497 = vpack.c.bf16 %v400, %v400
      %v499 = vsel %vm403, %v285, 0
      %v502 = vsel %vm407, %v497, 0
      %504 = vmatprep.subr.bf16.mxu0 0
      %505 = vmatpush1.bf16.msra.mxu0 %v502
      %506 = vmatprep.subr.bf16.mxu0 0
      %507 = vmatpush1.bf16.msra.mxu0 0
      %508 = vmatprep.subr.bf16.mxu0 0
      %509 = vmatpush1.bf16.msra.mxu0 0
      %510 = vmatprep.subr.bf16.mxu0 0
      %511 = vmatpush1.bf16.msra.mxu0 0
      %512 = vmatprep.subr.bf16.mxu0 0
      %513 = vmatpush1.bf16.msra.mxu0 0
      %514 = vmatprep.subr.bf16.mxu0 0
      %515 = vmatpush1.bf16.msra.mxu0 0
      %516 = vmatprep.subr.bf16.mxu0 0
      %517 = vmatpush1.bf16.msra.mxu0 0
      %518 = vmatprep.subr.bf16.mxu0 0
      %519 = vmatpush1.bf16.msra.mxu0 0
      %520 = vmatprep.subr.bf16.mxu0 0
      %521 = vmatpush1.bf16.msra.mxu0 0
      %522 = vmatprep.subr.bf16.mxu0 0
      %523 = vmatpush1.bf16.msra.mxu0 0
      %524 = vmatprep.subr.bf16.mxu0 0
      %525 = vmatpush1.bf16.msra.mxu0 0
      %526 = vmatprep.subr.bf16.mxu0 0
      %527 = vmatpush1.bf16.msra.mxu0 0
      %528 = vmatprep.subr.bf16.mxu0 0
      %529 = vmatpush1.bf16.msra.mxu0 0
      %530 = vmatprep.subr.bf16.mxu0 0
      %531 = vmatpush1.bf16.msra.mxu0 0
      %532 = vmatprep.subr.bf16.mxu0 0
      %533 = vmatpush1.bf16.msra.mxu0 0
      %534 = vmatprep.subr.bf16.mxu0 0
      %535 = vmatpush1.bf16.msra.mxu0 0
      %536 = vmatprep.mubr.bf16.mxu0 0
      %537 = vmatmul.mubr.bf16.gmra.mrb[0].mxu0 %v499
      %v538 = vpop.f32.mrb[0].mxu0
      %v539 = vadd.f32 0.0, %v538
      %v540 = vpop.f32.mrb[0].mxu0
      %v541 = vpop.f32.mrb[0].mxu0
      %v542 = vpop.f32.mrb[0].mxu0
      %543 = vdwg.mxu0
      %v544 = vadd.f32 %v492, %v539
      %v545 = vadd.f32 %v544, %v300
      %v546 = vmax.f32 %v545, 0.0
      %v547 = vpack.c.bf16 %v546, %v546
      %v552 = vunpack.c.l.b16 %v286
      %v553 = vunpack.c.l.b16 %v287
      %v554 = vunpack.c.l.b16 %v288
      %v555 = vunpack.c.l.b16 %v289
      %v556 = vpack.c.b16 %v553, %v552
      %v557 = vpack.c.b16 %v555, %v554
      %v559 = vsel %vm403, %v556, 0
      %v562 = vsel %vm403, %v557, 0
      %v565 = vsel %vm407, %v547, 0
      %567 = vmatprep.subr.bf16.mxu0 0
      %568 = vmatpush1.bf16.msra.mxu0 %v565
      %569 = vmatprep.subr.bf16.mxu0 0
      %570 = vmatpush1.bf16.msra.mxu0 0
      %571 = vmatprep.subr.bf16.mxu0 0
      %572 = vmatpush1.bf16.msra.mxu0 0
      %573 = vmatprep.subr.bf16.mxu0 0
      %574 = vmatpush1.bf16.msra.mxu0 0
      %575 = vmatprep.subr.bf16.mxu0 0
      %576 = vmatpush1.bf16.msra.mxu0 0
      %577 = vmatprep.subr.bf16.mxu0 0
      %578 = vmatpush1.bf16.msra.mxu0 0
      %579 = vmatprep.subr.bf16.mxu0 0
      %580 = vmatpush1.bf16.msra.mxu0 0
      %581 = vmatprep.subr.bf16.mxu0 0
      %582 = vmatpush1.bf16.msra.mxu0 0
      %583 = vmatprep.subr.bf16.mxu0 0
      %584 = vmatpush1.bf16.msra.mxu0 0
      %585 = vmatprep.subr.bf16.mxu0 0
      %586 = vmatpush1.bf16.msra.mxu0 0
      %587 = vmatprep.subr.bf16.mxu0 0
      %588 = vmatpush1.bf16.msra.mxu0 0
      %589 = vmatprep.subr.bf16.mxu0 0
      %590 = vmatpush1.bf16.msra.mxu0 0
      %591 = vmatprep.subr.bf16.mxu0 0
      %592 = vmatpush1.bf16.msra.mxu0 0
      %593 = vmatprep.subr.bf16.mxu0 0
      %594 = vmatpush1.bf16.msra.mxu0 0
      %595 = vmatprep.subr.bf16.mxu0 0
      %596 = vmatpush1.bf16.msra.mxu0 0
      %597 = vmatprep.subr.bf16.mxu0 0
      %598 = vmatpush1.bf16.msra.mxu0 0
      %599 = vmatprep.mubr.bf16.mxu0 0
      %600 = vmatmul.mubr.bf16.gmra.mrb[0].mxu0 %v559
      %v601 = vpop.f32.mrb[0].mxu0
      %v602 = vadd.f32 %v309, %v601
      %v603 = vpop.f32.mrb[0].mxu0
      %v604 = vpop.f32.mrb[0].mxu0
      %v605 = vadd.f32 %v314, %v604
      %v606 = vpop.f32.mrb[0].mxu0
      %607 = vmatprep.mubr.bf16.mxu0 0
      %608 = vmatmul.mubr.bf16.gmra.mrb[0].mxu0 %v562
      %v609 = vpop.f32.mrb[0].mxu0
      %v610 = vadd.f32 %v319, %v609
      %v611 = vpop.f32.mrb[0].mxu0
      %v612 = vpop.f32.mrb[0].mxu0
      %v613 = vadd.f32 %v324, %v612
      %v614 = vpop.f32.mrb[0].mxu0
      %615 = vdwg.mxu0
      %v616 = vadd.f32 %v602, %v330
      %v617 = vadd.f32 %v605, %v331
      %v618 = vadd.f32 %v610, %v332
      %v619 = vadd.f32 %v613, %v333
      %v620 = vmax.f32 %v616, 0.0
      %v621 = vmax.f32 %v617, 0.0
      %v622 = vmax.f32 %v618, 0.0
      %v623 = vmax.f32 %v619, 0.0
      %vm624 = vcmask 130048
      %625 = vst.msk [vmem:[%s278] sm:$0xff] %vm624, %v620
      %626 = vst.msk [vmem:[%s278 + $0x8] sm:$0xff] %vm624, %v621
      %627 = vst.msk [vmem:[%s278 + $0x10] sm:$0xff] %vm624, %v622
      %628 = vst.msk [vmem:[%s278 + $0x18] sm:$0xff] %vm624, %v623
      %p629 = scmp.lt.s32.totalorder %s18, 1
      %s630 = scalar_select %p629, %s18, 1
      %s631 = smul.addr %s630, 4
      %s632 = smul.addr %s631, 8
      %s633 = scalar_lea.vmem %s7, %s632
      // Predicated region
      $region49: #{bottleneck_forward.1} parent=47 // pred_check
        %p634 = pneg %p188
      $region50: #{bottleneck_forward.1} parent=47 // pred_check_branch
        %636 = sbr.rel (%p634) target = $region52
      $region51: #{bottleneck_forward.1} parent=47 // pred_region
        _
      $region52: #{bottleneck_forward.1} parent=47 // pred_fallthru
        _
    $region48: #{bottleneck_forward.1} parent=5 // pred_fallthru
      _
    %p637 = scmp.le.s32.totalorder 2, %s13
    // Predicated region
    $region53: #{bottleneck_forward.1} parent=5 // pred_check
      %p638 = pneg %p637
    $region54: #{bottleneck_forward.1} parent=5 // pred_check_branch
      %640 = sbr.rel (%p638) target = $region56
    $region55: #{bottleneck_forward.1} parent=5 // pred_region
      %s641 = ssub.s32 %s13, 2
      // Predicated region
      $region57: #{bottleneck_forward.1} parent=55 // pred_check
        %p642 = pneg %p194
      $region58: #{bottleneck_forward.1} parent=55 // pred_check_branch
        %644 = sbr.rel (%p642) target = $region60
      $region59: #{bottleneck_forward.1} parent=55 // pred_region
        %p645 = scmp.lt.s32.totalorder %s19, 1
        %s646 = scalar_select %p645, %s19, 1
        %s647 = smul.addr %s646, 4
        %s648 = smul.addr %s647, 8
        %s649 = scalar_lea.vmem %s7, %s648
      $region60: #{bottleneck_forward.1} parent=55 // pred_fallthru
        _
    $region56: #{bottleneck_forward.1} parent=5 // pred_fallthru
      _
  $region6: #{bottleneck_forward.1} parent=0 // loop_footer
    %s17 = sadd.s32 1, %s13
  $region7: #{bottleneck_forward.1} parent=0 // loop_footer_branch
    %12 = sbr.rel target = $region3
  $region8: #{bottleneck_forward.1} parent=0 // loop_exit
    _

</llo_original>
